<compile_context>
chip_gen: v7x
topology: tpu7x:2x2x1
jax: 0.10.0
libtpu: 0.0.40
codegen_flags: <defaults>
</compile_context>

<pallas_src>
import jax
import jax.numpy as jnp
from jax.experimental import pallas as pl
from jax.experimental.pallas import tpu as pltpu

CIN = 1024
CMID = 128
N_DISC = 10
N_MU = 2
N_VAR = 2
N_HEADS = N_DISC + N_MU + N_VAR      # 14 real output lanes
N_PAD = 128                          # lane-dense padded output width
EXP_LO = N_DISC + N_MU               # exp applies to lanes [12, 14)
EXP_HI = N_HEADS
TILE_M = 1024                        # rows per grid step (large-M case)


def _round_up(x, m):
    return ((x + m - 1) // m) * m


def q_kernel(x_ref, w_ref, b_ref, out_ref):
    # x_ref:   (tile_m, 1024) f32   (tiled over rows)
    # w_ref:   (1024, 128)    f32   (folded + zero-padded weights, resident)
    # b_ref:   (1, 128)       f32   (folded + zero-padded bias, resident)
    # out_ref: (tile_m, 128)  bf16  (lane-dense; cols 0:10 disc, 10:12 mu,
    #                                12:14 exp(var-logit), 14:128 zero padding)
    z = jnp.dot(x_ref[...], w_ref[...],
                preferred_element_type=jnp.float32) + b_ref[...]
    # Single-vreg (1, 128) lane mask; broadcast in the select.  exp() runs on
    # the EUP (its own VLIW slot) so it is effectively free on this DMA-bound
    # path; padded lanes hold z = 0 and the mask keeps them at 0.
    cols = jax.lax.broadcasted_iota(jnp.int32, (1, N_PAD), 1)
    exp_mask = (cols >= EXP_LO) & (cols < EXP_HI)
    out_ref[...] = jnp.where(exp_mask, jnp.exp(z), z).astype(out_ref.dtype)


def fold_params(params):
    """Fold the bias-free 1024->128 projection into the three heads.

    Run ONCE (outside the per-step forward) and cache the result:
        W_eff = w1 @ [wd | wm | wv]  -> (1024, 14), zero-padded to (1024, 128)
        b_eff = [bd | bm | bv]       -> (1, 14),    zero-padded to (1, 128)
    """
    w_heads = jnp.concatenate([params["wd"], params["wm"], params["wv"]], axis=1)
    w_eff = jnp.dot(params["w1"], w_heads)                         # (1024, 14)
    b_eff = jnp.concatenate([params["bd"], params["bm"], params["bv"]], axis=1)
    w_eff = jnp.pad(w_eff, ((0, 0), (0, N_PAD - N_HEADS))).astype(jnp.float32)
    b_eff = jnp.pad(b_eff, ((0, 0), (0, N_PAD - N_HEADS))).astype(jnp.float32)
    return w_eff, b_eff


@jax.jit
def q_forward(x_nchw, w_eff, b_eff):
    """x_nchw: [B, 1024, H, W] float32; w_eff/b_eff from fold_params().
    Returns (disc_logits, mu, var), each squeezed like torch .squeeze()."""
    B, Cin, H, W = x_nchw.shape
    assert Cin == CIN
    M = B * H * W

    # ---- NCHW -> (M, Cin) rows (pure reshape when H == W == 1) ----
    if H == 1 and W == 1:
        x_flat = x_nchw.reshape(M, Cin)
    else:
        x_flat = jnp.transpose(x_nchw, (0, 2, 3, 1)).reshape(M, Cin)
    x_flat = x_flat.astype(jnp.float32)     # no bf16 HBM copy; cast is a no-op

    # ---- tile M: >=2 grid steps when M is moderate (dual-TC on v7x),
    #      rows rounded to 16-sublane multiples, capped at TILE_M ----
    tile_m = min(TILE_M, max(16, _round_up(-(-M // 2), 16)))
    m_padded = _round_up(M, tile_m)
    if m_padded != M:
        x_flat = jnp.pad(x_flat, ((0, m_padded - M), (0, 0)))
    grid = (m_padded // tile_m,)

    cost = pl.CostEstimate(
        flops=2 * m_padded * CIN * N_PAD,
        transcendentals=m_padded * N_PAD,
        bytes_accessed=(m_padded * CIN * 4          # x read (f32)
                        + CIN * N_PAD * 4 + N_PAD * 4   # resident weights/bias
                        + m_padded * N_PAD * 2),    # out write (bf16)
    )

    out = pl.pallas_call(
        q_kernel,
        out_shape=jax.ShapeDtypeStruct((m_padded, N_PAD), jnp.bfloat16),
        grid=grid,
        in_specs=[
            pl.BlockSpec((tile_m, CIN), lambda i: (i, 0)),     # x tiles over M
            pl.BlockSpec((CIN, N_PAD), lambda i: (0, 0)),      # weights resident
            pl.BlockSpec((1, N_PAD), lambda i: (0, 0)),        # bias resident
        ],
        out_specs=pl.BlockSpec((tile_m, N_PAD), lambda i: (i, 0)),
        compiler_params=pltpu.CompilerParams(
            dimension_semantics=("parallel",),    # dual-TC sharding on v7x
            vmem_limit_bytes=24 * 1024 * 1024,    # working set ~10 MiB
        ),
        cost_estimate=cost,
    )(x_flat, w_eff, b_eff)

    out = out[:M].astype(jnp.float32)            # drop row padding, upcast once
    disc = out[:, :N_DISC]
    mu = out[:, N_DISC:EXP_LO]
    var = out[:, EXP_LO:EXP_HI]

    # (M, Cout) -> NCHW, then mimic torch .squeeze() (drop all size-1 dims)
    def to_nchw_and_squeeze(o):
        cout = o.shape[-1]
        o = o.reshape(B, H, W, cout).transpose(0, 3, 1, 2)     # [B, Cout, H, W]
        return jnp.squeeze(o)

    return (to_nchw_and_squeeze(disc),
            to_nchw_and_squeeze(mu),
            to_nchw_and_squeeze(var))


def init_params(key):
    k1, k2, k3, k4, k5, k6, k7 = jax.random.split(key, 7)
    scale1 = 1.0 / jnp.sqrt(1024.0)
    scale2 = 1.0 / jnp.sqrt(128.0)
    # 1x1 conv weights stored as (Cin, Cout) matrices; biases as (1, Cout).
    return {
        "w1": jax.random.normal(k1, (CIN, CMID), jnp.float32) * scale1,
        "wd": jax.random.normal(k2, (CMID, N_DISC), jnp.float32) * scale2,
        "bd": jax.random.normal(k3, (1, N_DISC), jnp.float32) * scale2,
        "wm": jax.random.normal(k4, (CMID, N_MU), jnp.float32) * scale2,
        "bm": jax.random.normal(k5, (1, N_MU), jnp.float32) * scale2,
        "wv": jax.random.normal(k6, (CMID, N_VAR), jnp.float32) * scale2,
        "bv": jax.random.normal(k7, (1, N_VAR), jnp.float32) * scale2,
    }


if __name__ == "__main__":
    key = jax.random.PRNGKey(0)
    kx, kp = jax.random.split(key)

    # Typical InfoGAN Q-head input: [B, 1024, 1, 1]
    B, C, H, W = 2, CIN, 1, 1
    x = jax.random.normal(kx, (B, C, H, W), jnp.float32)
    params = init_params(kp)

    # Fold once (would be cached in real usage), then run the kernel.
    w_eff, b_eff = fold_params(params)
    w_eff, b_eff = jax.block_until_ready((w_eff, b_eff))

    disc_logits, mu, var = q_forward(x, w_eff, b_eff)
    jax.block_until_ready((disc_logits, mu, var))

    # Sanity check against the plain-JAX, unfolded f32 reference.
    # (Folded f32 accumulation + bf16 output store -> modest tolerance.)
    x_flat = jnp.transpose(x, (0, 2, 3, 1)).reshape(B * H * W, C)
    y_ref = x_flat @ params["w1"]
    disc_ref = y_ref @ params["wd"] + params["bd"]
    mu_ref = y_ref @ params["wm"] + params["bm"]
    var_ref = jnp.exp(y_ref @ params["wv"] + params["bv"])

    def sq(o, cout):
        return jnp.squeeze(o.reshape(B, H, W, cout).transpose(0, 3, 1, 2))

    assert jnp.allclose(disc_logits, sq(disc_ref, N_DISC), rtol=2e-2, atol=2e-2)
    assert jnp.allclose(mu, sq(mu_ref, N_MU), rtol=2e-2, atol=2e-2)
    assert jnp.allclose(var, sq(var_ref, N_VAR), rtol=2e-2, atol=2e-2)

    print("KERNEL_OK")
</pallas_src>

<mosaic_0001>
module attributes {stable_mosaic.version = 11 : i64} {
  func.func @q_kernel(%arg0: i32, %arg1: memref<16x1024xf32, #tpu.memory_space<vmem>>, %arg2: memref<1024x128xf32, #tpu.memory_space<vmem>>, %arg3: memref<1x128xf32, #tpu.memory_space<vmem>>, %arg4: memref<16x128xbf16, #tpu.memory_space<vmem>>) attributes {dimension_semantics = [#tpu.dimension_semantics<parallel>], iteration_bounds = array<i64: 1>, scalar_prefetch = 0 : i64, scratch_operands = 0 : i64, tpu.core_type = #tpu.core_type<tc>, window_params = [{transform_indices = @transform_0, window_bounds = array<i64: 16, 1024>}, {pipeline_mode = #tpu.pipeline_mode<synchronous>, transform_indices = @transform_1, window_bounds = array<i64: 1024, 128>}, {pipeline_mode = #tpu.pipeline_mode<synchronous>, transform_indices = @transform_2, window_bounds = array<i64: 1, 128>}, {transform_indices = @transform_3, window_bounds = array<i64: 16, 128>}]} {
    %c0 = arith.constant 0 : index
    %c0_0 = arith.constant 0 : index
    %0 = vector.load %arg1[%c0, %c0_0] : memref<16x1024xf32, #tpu.memory_space<vmem>>, vector<16x1024xf32>
    %c0_1 = arith.constant 0 : index
    %c0_2 = arith.constant 0 : index
    %1 = vector.load %arg2[%c0_1, %c0_2] : memref<1024x128xf32, #tpu.memory_space<vmem>>, vector<1024x128xf32>
    %cst = arith.constant dense<0.000000e+00> : vector<16x128xf32>
    %2 = tpu.matmul %0, %1, %cst {dimension_numbers = #tpu.dot_dimension_numbers<[1], [0], [0], [1], [0, 0, 1, 1], [], []>} : vector<16x1024xf32>, vector<1024x128xf32>, vector<16x128xf32> -> vector<16x128xf32>
    %c0_3 = arith.constant 0 : index
    %c0_4 = arith.constant 0 : index
    %3 = vector.load %arg3[%c0_3, %c0_4] : memref<1x128xf32, #tpu.memory_space<vmem>>, vector<1x128xf32>
    %4 = vector.broadcast %3 : vector<1x128xf32> to vector<16x128xf32>
    %5 = arith.addf %2, %4 : vector<16x128xf32>
    %6 = tpu.iota {dimensions = array<i32: 1>} : vector<1x128xi32>
    %c12_i32 = arith.constant 12 : i32
    %7 = vector.broadcast %c12_i32 : i32 to vector<1x128xi32>
    %8 = arith.cmpi sge, %6, %7 : vector<1x128xi32>
    %c14_i32 = arith.constant 14 : i32
    %9 = vector.broadcast %c14_i32 : i32 to vector<1x128xi32>
    %10 = arith.cmpi slt, %6, %9 : vector<1x128xi32>
    %11 = arith.andi %8, %10 : vector<1x128xi1>
    %12 = math.exp %5 : vector<16x128xf32>
    %13 = vector.shape_cast %11 : vector<1x128xi1> to vector<1x128xi1>
    %14 = vector.broadcast %13 : vector<1x128xi1> to vector<16x128xi1>
    %15 = arith.select %14, %12, %5 : vector<16x128xi1>, vector<16x128xf32>
    %16 = arith.truncf %15 : vector<16x128xf32> to vector<16x128xbf16>
    %c0_5 = arith.constant 0 : index
    %c0_6 = arith.constant 0 : index
    %17 = vector.load %arg4[%c0_5, %c0_6] : memref<16x128xbf16, #tpu.memory_space<vmem>>, vector<16x128xbf16>
    tpu.vector_store %arg4[%c0_5, %c0_6], %16 {strides = array<i32>} : memref<16x128xbf16, #tpu.memory_space<vmem>>, vector<16x128xbf16>,
    return
  }
  func.func @transform_0(%arg0: i32) -> (i32, i32) {
    %c0_i32 = arith.constant 0 : i32
    %c0_i32_0 = arith.constant 0 : i32
    return %arg0, %c0_i32 : i32, i32
  }
  func.func @transform_1(%arg0: i32) -> (i32, i32) {
    %c0_i32 = arith.constant 0 : i32
    %c0_i32_0 = arith.constant 0 : i32
    %c0_i32_1 = arith.constant 0 : i32
    return %c0_i32, %c0_i32_0 : i32, i32
  }
  func.func @transform_2(%arg0: i32) -> (i32, i32) {
    %c0_i32 = arith.constant 0 : i32
    %c0_i32_0 = arith.constant 0 : i32
    %c0_i32_1 = arith.constant 0 : i32
    return %c0_i32, %c0_i32_0 : i32, i32
  }
  func.func @transform_3(%arg0: i32) -> (i32, i32) {
    %c0_i32 = arith.constant 0 : i32
    %c0_i32_0 = arith.constant 0 : i32
    return %arg0, %c0_i32 : i32, i32
  }
}

</mosaic_0001>

<llo_original>
// kernel: q_forward.1
$region0: #{q_forward.1}
  #allocation0 [shape = 'u32[]', space=smem, size = 0x4, offset = 0x4, fixed_abs, tag = 'smem constant byte address 0x4 - core index']
  #allocation1 [shape = 'u32[144,128]{1,0:T(1,128)}', space=vmem, size = 0x12000, scoped, tag = 'internal scratch']
  %s0 = inlined_call_operand.vmem [shape: f32[16,1024], index: 0, kind: input, shape index: {}]
  %s1 = inlined_call_operand.hbm [shape: f32[1024,128], index: 1, kind: input, shape index: {}]
  %s2 = inlined_call_operand.vmem [shape: f32[1,128], index: 2, kind: input, shape index: {}]
  %s3 = inlined_call_operand.vmem [shape: bf16[16,128], index: 3, kind: output, shape index: {}]
  %s4 = sld [smem:[#allocation0]]
  $region26: #{q_forward.1} parent=0
    _
  %s6 = ssub.s32 1, %s4
  %s7 = scalar_select 0, %s6, %s4
  $region1: #{q_forward.1} parent=0
    #allocation2 [shape = 'u8[524288]{0}', space=vmem, size = 0x80000, scoped, tag = 'input window, operand 1, single buffered']
    #allocation3 [shape = 's32[1]{0}', space=sflag, size = 0x4, scoped, tag = 'scoped memory for q_forward.1']
    %8 = vsyncpa [#allocation3], 0
    // Predicated region
    $region2: #{q_forward.1} parent=1 // pred_check
      _
    $region3: #{q_forward.1} parent=1 // pred_check_branch
      %10 = sbr.rel (0) target = $region5
    $region4: #{q_forward.1} parent=1 // pred_region
      _
    $region5: #{q_forward.1} parent=1 // pred_fallthru
      _
    // Predicated region
    $region6: #{q_forward.1} parent=1 // pred_check
      _
    $region7: #{q_forward.1} parent=1 // pred_check_branch
      %12 = sbr.rel (0) target = $region9
    $region8: #{q_forward.1} parent=1 // pred_region
      %s14 = ssub.s32 16384, 16384
      %15 = vsyncadd [#allocation3], %s14
      %s16 = sshll.u32 [#allocation2], 4
      %s17 = int_to_ptr.vmem [resolvable:$true] %s16
      %22 = dma.hbm_to_vmem [thread:$0]  %s1, 16384, %s17, [#allocation3], 128, 128, 8
    $region9: #{q_forward.1} parent=1 // pred_fallthru
      _
    // Predicated region
    $region10: #{q_forward.1} parent=1 // pred_check
      _
    $region11: #{q_forward.1} parent=1 // pred_check_branch
      %24 = sbr.rel (0) target = $region13
    $region12: #{q_forward.1} parent=1 // pred_region
      _
    $region13: #{q_forward.1} parent=1 // pred_fallthru
      _
    // Predicated region
    $region14: #{q_forward.1} parent=1 // pred_check
      _
    $region15: #{q_forward.1} parent=1 // pred_check_branch
      %26 = sbr.rel (0) target = $region17
    $region16: #{q_forward.1} parent=1 // pred_region
      %27 = dma.done [#allocation3], 16384
    $region17: #{q_forward.1} parent=1 // pred_fallthru
      _
    %v28 = vld [vmem:[%s0] sm:$0xff]
    %v29 = vld [vmem:[%s0 + $0x8] sm:$0xff]
    %v30 = vld [vmem:[%s0 + $0x10] sm:$0xff]
    %v31 = vld [vmem:[%s0 + $0x18] sm:$0xff]
    %v32 = vld [vmem:[%s0 + $0x20] sm:$0xff]
    %v33 = vld [vmem:[%s0 + $0x28] sm:$0xff]
    %v34 = vld [vmem:[%s0 + $0x30] sm:$0xff]
    %v35 = vld [vmem:[%s0 + $0x38] sm:$0xff]
    %v36 = vld [vmem:[%s0 + $0x40] sm:$0xff]
    %v37 = vld [vmem:[%s0 + $0x48] sm:$0xff]
    %v38 = vld [vmem:[%s0 + $0x50] sm:$0xff]
    %v39 = vld [vmem:[%s0 + $0x58] sm:$0xff]
    %v40 = vld [vmem:[%s0 + $0x60] sm:$0xff]
    %v41 = vld [vmem:[%s0 + $0x68] sm:$0xff]
    %v42 = vld [vmem:[%s0 + $0x70] sm:$0xff]
    %v43 = vld [vmem:[%s0 + $0x78] sm:$0xff]
    %v44 = vld [vmem:[#allocation2] sm:$0xff]
    %v45 = vld [vmem:[#allocation2 + $0x8] sm:$0xff]
    %v46 = vld [vmem:[#allocation2 + $0x10] sm:$0xff]
    %v47 = vld [vmem:[#allocation2 + $0x18] sm:$0xff]
    %v48 = vld [vmem:[#allocation2 + $0x20] sm:$0xff]
    %v49 = vld [vmem:[#allocation2 + $0x28] sm:$0xff]
    %v50 = vld [vmem:[#allocation2 + $0x30] sm:$0xff]
    %v51 = vld [vmem:[#allocation2 + $0x38] sm:$0xff]
    %v52 = vld [vmem:[#allocation2 + $0x40] sm:$0xff]
    %v53 = vld [vmem:[#allocation2 + $0x48] sm:$0xff]
    %v54 = vld [vmem:[#allocation2 + $0x50] sm:$0xff]
    %v55 = vld [vmem:[#allocation2 + $0x58] sm:$0xff]
    %v56 = vld [vmem:[#allocation2 + $0x60] sm:$0xff]
    %v57 = vld [vmem:[#allocation2 + $0x68] sm:$0xff]
    %v58 = vld [vmem:[#allocation2 + $0x70] sm:$0xff]
    %v59 = vld [vmem:[#allocation2 + $0x78] sm:$0xff]
    %v60 = vld [vmem:[#allocation2 + $0x80] sm:$0xff]
    %v61 = vld [vmem:[#allocation2 + $0x88] sm:$0xff]
    %v62 = vld [vmem:[#allocation2 + $0x90] sm:$0xff]
    %v63 = vld [vmem:[#allocation2 + $0x98] sm:$0xff]
    %v64 = vld [vmem:[#allocation2 + $0xa0] sm:$0xff]
    %v65 = vld [vmem:[#allocation2 + $0xa8] sm:$0xff]
    %v66 = vld [vmem:[#allocation2 + $0xb0] sm:$0xff]
    %v67 = vld [vmem:[#allocation2 + $0xb8] sm:$0xff]
    %v68 = vld [vmem:[#allocation2 + $0xc0] sm:$0xff]
    %v69 = vld [vmem:[#allocation2 + $0xc8] sm:$0xff]
    %v70 = vld [vmem:[#allocation2 + $0xd0] sm:$0xff]
    %v71 = vld [vmem:[#allocation2 + $0xd8] sm:$0xff]
    %v72 = vld [vmem:[#allocation2 + $0xe0] sm:$0xff]
    %v73 = vld [vmem:[#allocation2 + $0xe8] sm:$0xff]
    %v74 = vld [vmem:[#allocation2 + $0xf0] sm:$0xff]
    %v75 = vld [vmem:[#allocation2 + $0xf8] sm:$0xff]
    %v76 = vld [vmem:[#allocation2 + $0x100] sm:$0xff]
    %v77 = vld [vmem:[#allocation2 + $0x108] sm:$0xff]
    %v78 = vld [vmem:[#allocation2 + $0x110] sm:$0xff]
    %v79 = vld [vmem:[#allocation2 + $0x118] sm:$0xff]
    %v80 = vld [vmem:[#allocation2 + $0x120] sm:$0xff]
    %v81 = vld [vmem:[#allocation2 + $0x128] sm:$0xff]
    %v82 = vld [vmem:[#allocation2 + $0x130] sm:$0xff]
    %v83 = vld [vmem:[#allocation2 + $0x138] sm:$0xff]
    %v84 = vld [vmem:[#allocation2 + $0x140] sm:$0xff]
    %v85 = vld [vmem:[#allocation2 + $0x148] sm:$0xff]
    %v86 = vld [vmem:[#allocation2 + $0x150] sm:$0xff]
    %v87 = vld [vmem:[#allocation2 + $0x158] sm:$0xff]
    %v88 = vld [vmem:[#allocation2 + $0x160] sm:$0xff]
    %v89 = vld [vmem:[#allocation2 + $0x168] sm:$0xff]
    %v90 = vld [vmem:[#allocation2 + $0x170] sm:$0xff]
    %v91 = vld [vmem:[#allocation2 + $0x178] sm:$0xff]
    %v92 = vld [vmem:[#allocation2 + $0x180] sm:$0xff]
    %v93 = vld [vmem:[#allocation2 + $0x188] sm:$0xff]
    %v94 = vld [vmem:[#allocation2 + $0x190] sm:$0xff]
    %v95 = vld [vmem:[#allocation2 + $0x198] sm:$0xff]
    %v96 = vld [vmem:[#allocation2 + $0x1a0] sm:$0xff]
    %v97 = vld [vmem:[#allocation2 + $0x1a8] sm:$0xff]
    %v98 = vld [vmem:[#allocation2 + $0x1b0] sm:$0xff]
    %v99 = vld [vmem:[#allocation2 + $0x1b8] sm:$0xff]
    %v100 = vld [vmem:[#allocation2 + $0x1c0] sm:$0xff]
    %v101 = vld [vmem:[#allocation2 + $0x1c8] sm:$0xff]
    %v102 = vld [vmem:[#allocation2 + $0x1d0] sm:$0xff]
    %v103 = vld [vmem:[#allocation2 + $0x1d8] sm:$0xff]
    %v104 = vld [vmem:[#allocation2 + $0x1e0] sm:$0xff]
    %v105 = vld [vmem:[#allocation2 + $0x1e8] sm:$0xff]
    %v106 = vld [vmem:[#allocation2 + $0x1f0] sm:$0xff]
    %v107 = vld [vmem:[#allocation2 + $0x1f8] sm:$0xff]
    %v108 = vld [vmem:[#allocation2 + $0x200] sm:$0xff]
    %v109 = vld [vmem:[#allocation2 + $0x208] sm:$0xff]
    %v110 = vld [vmem:[#allocation2 + $0x210] sm:$0xff]
    %v111 = vld [vmem:[#allocation2 + $0x218] sm:$0xff]
    %v112 = vld [vmem:[#allocation2 + $0x220] sm:$0xff]
    %v113 = vld [vmem:[#allocation2 + $0x228] sm:$0xff]
    %v114 = vld [vmem:[#allocation2 + $0x230] sm:$0xff]
    %v115 = vld [vmem:[#allocation2 + $0x238] sm:$0xff]
    %v116 = vld [vmem:[#allocation2 + $0x240] sm:$0xff]
    %v117 = vld [vmem:[#allocation2 + $0x248] sm:$0xff]
    %v118 = vld [vmem:[#allocation2 + $0x250] sm:$0xff]
    %v119 = vld [vmem:[#allocation2 + $0x258] sm:$0xff]
    %v120 = vld [vmem:[#allocation2 + $0x260] sm:$0xff]
    %v121 = vld [vmem:[#allocation2 + $0x268] sm:$0xff]
    %v122 = vld [vmem:[#allocation2 + $0x270] sm:$0xff]
    %v123 = vld [vmem:[#allocation2 + $0x278] sm:$0xff]
    %v124 = vld [vmem:[#allocation2 + $0x280] sm:$0xff]
    %v125 = vld [vmem:[#allocation2 + $0x288] sm:$0xff]
    %v126 = vld [vmem:[#allocation2 + $0x290] sm:$0xff]
    %v127 = vld [vmem:[#allocation2 + $0x298] sm:$0xff]
    %v128 = vld [vmem:[#allocation2 + $0x2a0] sm:$0xff]
    %v129 = vld [vmem:[#allocation2 + $0x2a8] sm:$0xff]
    %v130 = vld [vmem:[#allocation2 + $0x2b0] sm:$0xff]
    %v131 = vld [vmem:[#allocation2 + $0x2b8] sm:$0xff]
    %v132 = vld [vmem:[#allocation2 + $0x2c0] sm:$0xff]
    %v133 = vld [vmem:[#allocation2 + $0x2c8] sm:$0xff]
    %v134 = vld [vmem:[#allocation2 + $0x2d0] sm:$0xff]
    %v135 = vld [vmem:[#allocation2 + $0x2d8] sm:$0xff]
    %v136 = vld [vmem:[#allocation2 + $0x2e0] sm:$0xff]
    %v137 = vld [vmem:[#allocation2 + $0x2e8] sm:$0xff]
    %v138 = vld [vmem:[#allocation2 + $0x2f0] sm:$0xff]
    %v139 = vld [vmem:[#allocation2 + $0x2f8] sm:$0xff]
    %v140 = vld [vmem:[#allocation2 + $0x300] sm:$0xff]
    %v141 = vld [vmem:[#allocation2 + $0x308] sm:$0xff]
    %v142 = vld [vmem:[#allocation2 + $0x310] sm:$0xff]
    %v143 = vld [vmem:[#allocation2 + $0x318] sm:$0xff]
    %v144 = vld [vmem:[#allocation2 + $0x320] sm:$0xff]
    %v145 = vld [vmem:[#allocation2 + $0x328] sm:$0xff]
    %v146 = vld [vmem:[#allocation2 + $0x330] sm:$0xff]
    %v147 = vld [vmem:[#allocation2 + $0x338] sm:$0xff]
    %v148 = vld [vmem:[#allocation2 + $0x340] sm:$0xff]
    %v149 = vld [vmem:[#allocation2 + $0x348] sm:$0xff]
    %v150 = vld [vmem:[#allocation2 + $0x350] sm:$0xff]
    %v151 = vld [vmem:[#allocation2 + $0x358] sm:$0xff]
    %v152 = vld [vmem:[#allocation2 + $0x360] sm:$0xff]
    %v153 = vld [vmem:[#allocation2 + $0x368] sm:$0xff]
    %v154 = vld [vmem:[#allocation2 + $0x370] sm:$0xff]
    %v155 = vld [vmem:[#allocation2 + $0x378] sm:$0xff]
    %v156 = vld [vmem:[#allocation2 + $0x380] sm:$0xff]
    %v157 = vld [vmem:[#allocation2 + $0x388] sm:$0xff]
    %v158 = vld [vmem:[#allocation2 + $0x390] sm:$0xff]
    %v159 = vld [vmem:[#allocation2 + $0x398] sm:$0xff]
    %v160 = vld [vmem:[#allocation2 + $0x3a0] sm:$0xff]
    %v161 = vld [vmem:[#allocation2 + $0x3a8] sm:$0xff]
    %v162 = vld [vmem:[#allocation2 + $0x3b0] sm:$0xff]
    %v163 = vld [vmem:[#allocation2 + $0x3b8] sm:$0xff]
    %v164 = vld [vmem:[#allocation2 + $0x3c0] sm:$0xff]
    %v165 = vld [vmem:[#allocation2 + $0x3c8] sm:$0xff]
    %v166 = vld [vmem:[#allocation2 + $0x3d0] sm:$0xff]
    %v167 = vld [vmem:[#allocation2 + $0x3d8] sm:$0xff]
    %v168 = vld [vmem:[#allocation2 + $0x3e0] sm:$0xff]
    %v169 = vld [vmem:[#allocation2 + $0x3e8] sm:$0xff]
    %v170 = vld [vmem:[#allocation2 + $0x3f0] sm:$0xff]
    %v171 = vld [vmem:[#allocation2 + $0x3f8] sm:$0xff]
    %v172 = vld [vmem:[%s2] sm:$0x1]
    %v174 = vlaneseq
    %v175 = vshrl.u32 %v174, 7
    %v176 = vsub.s32 0, %v175
    %v177 = vrot.slane %v172, %v176
    %179 = vmatprep.subr.mxu0 0.0
    %180 = vmatpush1.msra.mxu0 %v44
    %181 = vmatprep.subr.mxu0 0.0
    %182 = vmatpush1.msra.mxu0 %v45
    %183 = vmatprep.subr.mxu0 0.0
    %184 = vmatpush1.msra.mxu0 %v46
    %185 = vmatprep.subr.mxu0 0.0
    %186 = vmatpush1.msra.mxu0 %v47
    %187 = vmatprep.subr.mxu0 0.0
    %188 = vmatpush1.msra.mxu0 %v48
    %189 = vmatprep.subr.mxu0 0.0
    %190 = vmatpush1.msra.mxu0 %v49
    %191 = vmatprep.subr.mxu0 0.0
    %192 = vmatpush1.msra.mxu0 %v50
    %193 = vmatprep.subr.mxu0 0.0
    %194 = vmatpush1.msra.mxu0 %v51
    %195 = vmatprep.subr.mxu0 0.0
    %196 = vmatpush1.msra.mxu0 %v52
    %197 = vmatprep.subr.mxu0 0.0
    %198 = vmatpush1.msra.mxu0 %v53
    %199 = vmatprep.subr.mxu0 0.0
    %200 = vmatpush1.msra.mxu0 %v54
    %201 = vmatprep.subr.mxu0 0.0
    %202 = vmatpush1.msra.mxu0 %v55
    %203 = vmatprep.subr.mxu0 0.0
    %204 = vmatpush1.msra.mxu0 %v56
    %205 = vmatprep.subr.mxu0 0.0
    %206 = vmatpush1.msra.mxu0 %v57
    %207 = vmatprep.subr.mxu0 0.0
    %208 = vmatpush1.msra.mxu0 %v58
    %209 = vmatprep.subr.mxu0 0.0
    %210 = vmatpush1.msra.mxu0 %v59
    %211 = vmatprep.subr.mxu0 0.0
    %212 = vmatpush1.msra.mxu0 %v60
    %213 = vmatprep.subr.mxu0 0.0
    %214 = vmatpush1.msra.mxu0 %v61
    %215 = vmatprep.subr.mxu0 0.0
    %216 = vmatpush1.msra.mxu0 %v62
    %217 = vmatprep.subr.mxu0 0.0
    %218 = vmatpush1.msra.mxu0 %v63
    %219 = vmatprep.subr.mxu0 0.0
    %220 = vmatpush1.msra.mxu0 %v64
    %221 = vmatprep.subr.mxu0 0.0
    %222 = vmatpush1.msra.mxu0 %v65
    %223 = vmatprep.subr.mxu0 0.0
    %224 = vmatpush1.msra.mxu0 %v66
    %225 = vmatprep.subr.mxu0 0.0
    %226 = vmatpush1.msra.mxu0 %v67
    %227 = vmatprep.subr.mxu0 0.0
    %228 = vmatpush1.msra.mxu0 %v68
    %229 = vmatprep.subr.mxu0 0.0
    %230 = vmatpush1.msra.mxu0 %v69
    %231 = vmatprep.subr.mxu0 0.0
    %232 = vmatpush1.msra.mxu0 %v70
    %233 = vmatprep.subr.mxu0 0.0
    %234 = vmatpush1.msra.mxu0 %v71
    %235 = vmatprep.subr.mxu0 0.0
    %236 = vmatpush1.msra.mxu0 %v72
    %237 = vmatprep.subr.mxu0 0.0
    %238 = vmatpush1.msra.mxu0 %v73
    %239 = vmatprep.subr.mxu0 0.0
    %240 = vmatpush1.msra.mxu0 %v74
    %241 = vmatprep.subr.mxu0 0.0
    %242 = vmatpush1.msra.mxu0 %v75
    %243 = vmatprep.mubr.f32.mxu0 %v29
    %244 = vmatmul.mubr.f32.gmra.mrb[0].mxu0 %v28
    %v245 = vpop.f32.mrb[0].mxu0
    %v246 = vadd.f32 %v177, %v245
    %v247 = vpop.f32.mrb[0].mxu0
    %248 = vmatprep.mubr.f32.mxu0 %v37
    %249 = vmatmul.mubr.f32.gmra.mrb[0].mxu0 %v36
    %v250 = vpop.f32.mrb[0].mxu0
    %v251 = vadd.f32 %v177, %v250
    %v252 = vpop.f32.mrb[0].mxu0
    %253 = vdwg.mxu0
    %254 = vmatprep.subr.mxu0 0.0
    %255 = vmatpush1.msra.mxu0 %v76
    %256 = vmatprep.subr.mxu0 0.0
    %257 = vmatpush1.msra.mxu0 %v77
    %258 = vmatprep.subr.mxu0 0.0
    %259 = vmatpush1.msra.mxu0 %v78
    %260 = vmatprep.subr.mxu0 0.0
    %261 = vmatpush1.msra.mxu0 %v79
    %262 = vmatprep.subr.mxu0 0.0
    %263 = vmatpush1.msra.mxu0 %v80
    %264 = vmatprep.subr.mxu0 0.0
    %265 = vmatpush1.msra.mxu0 %v81
    %266 = vmatprep.subr.mxu0 0.0
    %267 = vmatpush1.msra.mxu0 %v82
    %268 = vmatprep.subr.mxu0 0.0
    %269 = vmatpush1.msra.mxu0 %v83
    %270 = vmatprep.subr.mxu0 0.0
    %271 = vmatpush1.msra.mxu0 %v84
    %272 = vmatprep.subr.mxu0 0.0
    %273 = vmatpush1.msra.mxu0 %v85
    %274 = vmatprep.subr.mxu0 0.0
    %275 = vmatpush1.msra.mxu0 %v86
    %276 = vmatprep.subr.mxu0 0.0
    %277 = vmatpush1.msra.mxu0 %v87
    %278 = vmatprep.subr.mxu0 0.0
    %279 = vmatpush1.msra.mxu0 %v88
    %280 = vmatprep.subr.mxu0 0.0
    %281 = vmatpush1.msra.mxu0 %v89
    %282 = vmatprep.subr.mxu0 0.0
    %283 = vmatpush1.msra.mxu0 %v90
    %284 = vmatprep.subr.mxu0 0.0
    %285 = vmatpush1.msra.mxu0 %v91
    %286 = vmatprep.subr.mxu0 0.0
    %287 = vmatpush1.msra.mxu0 %v92
    %288 = vmatprep.subr.mxu0 0.0
    %289 = vmatpush1.msra.mxu0 %v93
    %290 = vmatprep.subr.mxu0 0.0
    %291 = vmatpush1.msra.mxu0 %v94
    %292 = vmatprep.subr.mxu0 0.0
    %293 = vmatpush1.msra.mxu0 %v95
    %294 = vmatprep.subr.mxu0 0.0
    %295 = vmatpush1.msra.mxu0 %v96
    %296 = vmatprep.subr.mxu0 0.0
    %297 = vmatpush1.msra.mxu0 %v97
    %298 = vmatprep.subr.mxu0 0.0
    %299 = vmatpush1.msra.mxu0 %v98
    %300 = vmatprep.subr.mxu0 0.0
    %301 = vmatpush1.msra.mxu0 %v99
    %302 = vmatprep.subr.mxu0 0.0
    %303 = vmatpush1.msra.mxu0 %v100
    %304 = vmatprep.subr.mxu0 0.0
    %305 = vmatpush1.msra.mxu0 %v101
    %306 = vmatprep.subr.mxu0 0.0
    %307 = vmatpush1.msra.mxu0 %v102
    %308 = vmatprep.subr.mxu0 0.0
    %309 = vmatpush1.msra.mxu0 %v103
    %310 = vmatprep.subr.mxu0 0.0
    %311 = vmatpush1.msra.mxu0 %v104
    %312 = vmatprep.subr.mxu0 0.0
    %313 = vmatpush1.msra.mxu0 %v105
    %314 = vmatprep.subr.mxu0 0.0
    %315 = vmatpush1.msra.mxu0 %v106
    %316 = vmatprep.subr.mxu0 0.0
    %317 = vmatpush1.msra.mxu0 %v107
    %318 = vmatprep.mubr.f32.mxu0 %v31
    %319 = vmatmul.mubr.f32.gmra.mrb[0].mxu0 %v30
    %v320 = vpop.f32.mrb[0].mxu0
    %v321 = vadd.f32 %v246, %v320
    %v322 = vpop.f32.mrb[0].mxu0
    %323 = vmatprep.mubr.f32.mxu0 %v39
    %324 = vmatmul.mubr.f32.gmra.mrb[0].mxu0 %v38
    %v325 = vpop.f32.mrb[0].mxu0
    %v326 = vadd.f32 %v251, %v325
    %v327 = vpop.f32.mrb[0].mxu0
    %328 = vdwg.mxu0
    %329 = vmatprep.subr.mxu0 0.0
    %330 = vmatpush1.msra.mxu0 %v108
    %331 = vmatprep.subr.mxu0 0.0
    %332 = vmatpush1.msra.mxu0 %v109
    %333 = vmatprep.subr.mxu0 0.0
    %334 = vmatpush1.msra.mxu0 %v110
    %335 = vmatprep.subr.mxu0 0.0
    %336 = vmatpush1.msra.mxu0 %v111
    %337 = vmatprep.subr.mxu0 0.0
    %338 = vmatpush1.msra.mxu0 %v112
    %339 = vmatprep.subr.mxu0 0.0
    %340 = vmatpush1.msra.mxu0 %v113
    %341 = vmatprep.subr.mxu0 0.0
    %342 = vmatpush1.msra.mxu0 %v114
    %343 = vmatprep.subr.mxu0 0.0
    %344 = vmatpush1.msra.mxu0 %v115
    %345 = vmatprep.subr.mxu0 0.0
    %346 = vmatpush1.msra.mxu0 %v116
    %347 = vmatprep.subr.mxu0 0.0
    %348 = vmatpush1.msra.mxu0 %v117
    %349 = vmatprep.subr.mxu0 0.0
    %350 = vmatpush1.msra.mxu0 %v118
    %351 = vmatprep.subr.mxu0 0.0
    %352 = vmatpush1.msra.mxu0 %v119
    %353 = vmatprep.subr.mxu0 0.0
    %354 = vmatpush1.msra.mxu0 %v120
    %355 = vmatprep.subr.mxu0 0.0
    %356 = vmatpush1.msra.mxu0 %v121
    %357 = vmatprep.subr.mxu0 0.0
    %358 = vmatpush1.msra.mxu0 %v122
    %359 = vmatprep.subr.mxu0 0.0
    %360 = vmatpush1.msra.mxu0 %v123
    %361 = vmatprep.subr.mxu0 0.0
    %362 = vmatpush1.msra.mxu0 %v124
    %363 = vmatprep.subr.mxu0 0.0
    %364 = vmatpush1.msra.mxu0 %v125
    %365 = vmatprep.subr.mxu0 0.0
    %366 = vmatpush1.msra.mxu0 %v126
    %367 = vmatprep.subr.mxu0 0.0
    %368 = vmatpush1.msra.mxu0 %v127
    %369 = vmatprep.subr.mxu0 0.0
    %370 = vmatpush1.msra.mxu0 %v128
    %371 = vmatprep.subr.mxu0 0.0
    %372 = vmatpush1.msra.mxu0 %v129
    %373 = vmatprep.subr.mxu0 0.0
    %374 = vmatpush1.msra.mxu0 %v130
    %375 = vmatprep.subr.mxu0 0.0
    %376 = vmatpush1.msra.mxu0 %v131
    %377 = vmatprep.subr.mxu0 0.0
    %378 = vmatpush1.msra.mxu0 %v132
    %379 = vmatprep.subr.mxu0 0.0
    %380 = vmatpush1.msra.mxu0 %v133
    %381 = vmatprep.subr.mxu0 0.0
    %382 = vmatpush1.msra.mxu0 %v134
    %383 = vmatprep.subr.mxu0 0.0
    %384 = vmatpush1.msra.mxu0 %v135
    %385 = vmatprep.subr.mxu0 0.0
    %386 = vmatpush1.msra.mxu0 %v136
    %387 = vmatprep.subr.mxu0 0.0
    %388 = vmatpush1.msra.mxu0 %v137
    %389 = vmatprep.subr.mxu0 0.0
    %390 = vmatpush1.msra.mxu0 %v138
    %391 = vmatprep.subr.mxu0 0.0
    %392 = vmatpush1.msra.mxu0 %v139
    %393 = vmatprep.mubr.f32.mxu0 %v33
    %394 = vmatmul.mubr.f32.gmra.mrb[0].mxu0 %v32
    %v395 = vpop.f32.mrb[0].mxu0
    %v396 = vadd.f32 %v321, %v395
    %v397 = vpop.f32.mrb[0].mxu0
    %398 = vmatprep.mubr.f32.mxu0 %v41
    %399 = vmatmul.mubr.f32.gmra.mrb[0].mxu0 %v40
    %v400 = vpop.f32.mrb[0].mxu0
    %v401 = vadd.f32 %v326, %v400
    %v402 = vpop.f32.mrb[0].mxu0
    %403 = vdwg.mxu0
    %404 = vmatprep.subr.mxu0 0.0
    %405 = vmatpush1.msra.mxu0 %v140
    %406 = vmatprep.subr.mxu0 0.0
    %407 = vmatpush1.msra.mxu0 %v141
    %408 = vmatprep.subr.mxu0 0.0
    %409 = vmatpush1.msra.mxu0 %v142
    %410 = vmatprep.subr.mxu0 0.0
    %411 = vmatpush1.msra.mxu0 %v143
    %412 = vmatprep.subr.mxu0 0.0
    %413 = vmatpush1.msra.mxu0 %v144
    %414 = vmatprep.subr.mxu0 0.0
    %415 = vmatpush1.msra.mxu0 %v145
    %416 = vmatprep.subr.mxu0 0.0
    %417 = vmatpush1.msra.mxu0 %v146
    %418 = vmatprep.subr.mxu0 0.0
    %419 = vmatpush1.msra.mxu0 %v147
    %420 = vmatprep.subr.mxu0 0.0
    %421 = vmatpush1.msra.mxu0 %v148
    %422 = vmatprep.subr.mxu0 0.0
    %423 = vmatpush1.msra.mxu0 %v149
    %424 = vmatprep.subr.mxu0 0.0
    %425 = vmatpush1.msra.mxu0 %v150
    %426 = vmatprep.subr.mxu0 0.0
    %427 = vmatpush1.msra.mxu0 %v151
    %428 = vmatprep.subr.mxu0 0.0
    %429 = vmatpush1.msra.mxu0 %v152
    %430 = vmatprep.subr.mxu0 0.0
    %431 = vmatpush1.msra.mxu0 %v153
    %432 = vmatprep.subr.mxu0 0.0
    %433 = vmatpush1.msra.mxu0 %v154
    %434 = vmatprep.subr.mxu0 0.0
    %435 = vmatpush1.msra.mxu0 %v155
    %436 = vmatprep.subr.mxu0 0.0
    %437 = vmatpush1.msra.mxu0 %v156
    %438 = vmatprep.subr.mxu0 0.0
    %439 = vmatpush1.msra.mxu0 %v157
    %440 = vmatprep.subr.mxu0 0.0
    %441 = vmatpush1.msra.mxu0 %v158
    %442 = vmatprep.subr.mxu0 0.0
    %443 = vmatpush1.msra.mxu0 %v159
    %444 = vmatprep.subr.mxu0 0.0
    %445 = vmatpush1.msra.mxu0 %v160
    %446 = vmatprep.subr.mxu0 0.0
    %447 = vmatpush1.msra.mxu0 %v161
    %448 = vmatprep.subr.mxu0 0.0
    %449 = vmatpush1.msra.mxu0 %v162
    %450 = vmatprep.subr.mxu0 0.0
    %451 = vmatpush1.msra.mxu0 %v163
    %452 = vmatprep.subr.mxu0 0.0
    %453 = vmatpush1.msra.mxu0 %v164
    %454 = vmatprep.subr.mxu0 0.0
    %455 = vmatpush1.msra.mxu0 %v165
    %456 = vmatprep.subr.mxu0 0.0
    %457 = vmatpush1.msra.mxu0 %v166
    %458 = vmatprep.subr.mxu0 0.0
    %459 = vmatpush1.msra.mxu0 %v167
    %460 = vmatprep.subr.mxu0 0.0
    %461 = vmatpush1.msra.mxu0 %v168
    %462 = vmatprep.subr.mxu0 0.0
    %463 = vmatpush1.msra.mxu0 %v169
    %464 = vmatprep.subr.mxu0 0.0
    %465 = vmatpush1.msra.mxu0 %v170
    %466 = vmatprep.subr.mxu0 0.0
    %467 = vmatpush1.msra.mxu0 %v171
    %468 = vmatprep.mubr.f32.mxu0 %v35
    %469 = vmatmul.mubr.f32.gmra.mrb[0].mxu0 %v34
    %v470 = vpop.f32.mrb[0].mxu0
    %v471 = vadd.f32 %v396, %v470
    %v472 = vpop.f32.mrb[0].mxu0
    %473 = vmatprep.mubr.f32.mxu0 %v43
    %474 = vmatmul.mubr.f32.gmra.mrb[0].mxu0 %v42
    %v475 = vpop.f32.mrb[0].mxu0
    %v476 = vadd.f32 %v401, %v475
    %v477 = vpop.f32.mrb[0].mxu0
    %478 = vdwg.mxu0
    %v479 = vlaneseq
    %v480 = vand.u32 %v479, 127
    %vm481 = vcmp.ge.s32.totalorder %v480, 12
    %vm482 = vcmp.lt.s32.totalorder %v480, 14
    %vm483 = vmand %vm481, %vm482
    %v484 = vmul.f32 %v471, 1.442695
    %v485 = vpow.pop %v484
    %v486 = vmul.f32 %v476, 1.442695
    %v487 = vpow.pop %v486
    %v488 = vsel %vm483, 1, 0
    %vm489 = vcmp.eq.s32.totalorder %v488, 1
    %v490 = vsel %vm489, %v485, %v471
    %v491 = vsel %vm489, %v487, %v476
    %v492 = vpack.c.bf16 %v491, %v490
    %v494 = vunpack.c.l.b16 %v492
    %v495 = vunpack.c.h.b16 %v492
    %v496 = vpack.c.b16 %v494, %v494
    %v497 = vpack.c.b16 %v495, %v495
    %500 = vst [vmem:[%s3] sm:$0xf] %v496
    %501 = vst [vmem:[%s3 + $0x4] sm:$0xf] %v497
    // Predicated region
    $region18: #{q_forward.1} parent=1 // pred_check
      _
    $region19: #{q_forward.1} parent=1 // pred_check_branch
      %503 = sbr.rel (0) target = $region21
    $region20: #{q_forward.1} parent=1 // pred_region
      _
    $region21: #{q_forward.1} parent=1 // pred_fallthru
      _
    // Predicated region
    $region22: #{q_forward.1} parent=1 // pred_check
      _
    $region23: #{q_forward.1} parent=1 // pred_check_branch
      %505 = sbr.rel (0) target = $region25
    $region24: #{q_forward.1} parent=1 // pred_region
      _
    $region25: #{q_forward.1} parent=1 // pred_fallthru
      _
    %506 = vsyncpa [#allocation3], 1

</llo_original>
